<compile_context>
chip_gen: v5e
topology: v5e:2x2
jax: 0.10.0
libtpu: 0.0.40
codegen_flags: <defaults>
</compile_context>

<pallas_src>
import functools

import jax
import jax.numpy as jnp
from jax.experimental import pallas as pl
from jax.experimental.pallas import tpu as pltpu


def _standout_kernel(prev_ref, pit_ref, cur_ref, bits_ref, out_ref, *, alpha, beta):
    # (TB, F_in) @ (F_in, F_out) on the MXU, accumulate in f32.
    logits = jnp.dot(prev_ref[...], pit_ref[...], preferred_element_type=jnp.float32)
    p = jax.nn.sigmoid(jnp.float32(alpha) * logits + jnp.float32(beta))

    # Integer-domain dropout compare: keep element iff u > p with u = (bits>>8)/2^24.
    thresh = (p * jnp.float32(1 << 24)).astype(jnp.uint32)
    keep = (bits_ref[...] >> jnp.uint32(8)) > thresh

    cur = cur_ref[...]
    out_ref[...] = jnp.where(keep, cur, jnp.zeros_like(cur))


def _pick_row_tile(B, F_in, F_out, itemsize, budget_bytes=4 << 20):
    """Rows per grid step; double-buffered working set stays ~2x budget (< 8 MiB)."""
    # Per-row bytes in VMEM per step: prev + current + out (itemsize) + bits (4B).
    per_row = (F_in + 2 * F_out) * itemsize + F_out * 4
    tb = max(8, min(B, budget_bytes // max(per_row, 1)))
    if tb >= 256:
        tb = (tb // 256) * 256      # MXU-friendly on v6e/v7x
    elif tb >= 8:
        tb = (tb // 8) * 8          # sublane alignment
    return min(tb, B)


def standout_dropout(previous, current, pi, key, *, alpha, beta):
    """previous: (B, F_in), current: (B, F_out), pi: (F_out, F_in), key: PRNG key."""
    B, F_in = previous.shape
    F_out = pi.shape[0]
    assert current.shape == (B, F_out)
    assert pi.shape == (F_out, F_in)

    # Pre-transpose the weight so the kernel does a plain (TB, F_in) @ (F_in, F_out)
    # matmul (no transposed MXU feed / XLU transpose inside the kernel).
    pi_t = jnp.transpose(pi)                                   # (F_in, F_out)

    # Host-side uniform random bits (deterministic, one draw per output element).
    rand_bits = jax.random.bits(key, (B, F_out), dtype=jnp.uint32)

    TB = _pick_row_tile(B, F_in, F_out, jnp.dtype(current.dtype).itemsize)
    grid = (pl.cdiv(B, TB),)

    kernel = functools.partial(_standout_kernel, alpha=float(alpha), beta=float(beta))

    # TODO(synk): for real configs with lane-sparse F_out (not a multiple of 128),
    # pad F_out or fold B into the lane axis in the wrapper for unmasked vst writeback.
    return pl.pallas_call(
        kernel,
        out_shape=jax.ShapeDtypeStruct((B, F_out), current.dtype),
        grid=grid,
        in_specs=[
            pl.BlockSpec((TB, F_in), lambda i: (i, 0)),        # previous   (streamed)
            pl.BlockSpec((F_in, F_out), lambda i: (0, 0)),     # pi.T       (VMEM-resident)
            pl.BlockSpec((TB, F_out), lambda i: (i, 0)),       # current    (streamed)
            pl.BlockSpec((TB, F_out), lambda i: (i, 0)),       # rand bits  (streamed)
        ],
        out_specs=pl.BlockSpec((TB, F_out), lambda i: (i, 0)),
        compiler_params=pltpu.CompilerParams(
            dimension_semantics=("parallel",),                 # row tiles independent
        ),
    )(previous, pi_t, current, rand_bits)


if __name__ == "__main__":
    # Small shapes consistent with the module: previous (B, F_in), current (B, F_out).
    B, F_in, F_out = 8, 32, 32
    alpha, beta = 1.0, 0.5

    key = jax.random.PRNGKey(0)
    k_prev, k_cur, k_w, k_drop = jax.random.split(key, 4)

    previous = jax.random.normal(k_prev, (B, F_in), dtype=jnp.float32)
    current = jax.random.normal(k_cur, (B, F_out), dtype=jnp.float32)
    # last_layer.weight: (out_features, in_features), scale ~ 1/sqrt(F_in)
    pi = jax.random.normal(k_w, (F_out, F_in), dtype=jnp.float32) / jnp.sqrt(jnp.float32(F_in))

    out = standout_dropout(previous, current, pi, k_drop, alpha=alpha, beta=beta)
    out = jax.block_until_ready(out)

    # Sanity: output is elementwise either 0 or exactly `current` (mask gating).
    is_zero = jnp.isclose(out, 0.0)
    is_pass = jnp.isclose(out, current)
    assert bool(jnp.all(is_zero | is_pass)), "standout mask must gate `current` elementwise"
    assert out.shape == (B, F_out)
    assert out.dtype == current.dtype

    # Sanity: mask follows p = sigmoid(alpha * prev @ pi.T + beta) statistically —
    # just check p is well-formed and the drop rate is in (0, 1) territory.
    p_ref = jax.nn.sigmoid(alpha * previous @ pi.T + beta)
    assert bool(jnp.all((p_ref > 0) & (p_ref < 1)))

    print("KERNEL_OK")
</pallas_src>

<mosaic_0001>
module attributes {stable_mosaic.version = 11 : i64} {
  func.func @_standout_kernel(%arg0: i32, %arg1: memref<8x32xf32, #tpu.memory_space<vmem>>, %arg2: memref<32x32xf32, #tpu.memory_space<vmem>>, %arg3: memref<8x32xf32, #tpu.memory_space<vmem>>, %arg4: memref<8x32xi32, #tpu.memory_space<vmem>>, %arg5: memref<8x32xf32, #tpu.memory_space<vmem>>) attributes {dimension_semantics = [#tpu.dimension_semantics<parallel>], iteration_bounds = array<i64: 1>, scalar_prefetch = 0 : i64, scratch_operands = 0 : i64, tpu.core_type = #tpu.core_type<tc>, window_params = [{transform_indices = @transform_0, window_bounds = array<i64: 8, 32>}, {pipeline_mode = #tpu.pipeline_mode<synchronous>, transform_indices = @transform_1, window_bounds = array<i64: 32, 32>}, {transform_indices = @transform_2, window_bounds = array<i64: 8, 32>}, {transform_indices = @transform_3, window_bounds = array<i64: 8, 32>}, {transform_indices = @transform_4, window_bounds = array<i64: 8, 32>}]} {
    %c0 = arith.constant 0 : index
    %c0_0 = arith.constant 0 : index
    %0 = vector.load %arg1[%c0, %c0_0] : memref<8x32xf32, #tpu.memory_space<vmem>>, vector<8x32xf32>
    %c0_1 = arith.constant 0 : index
    %c0_2 = arith.constant 0 : index
    %1 = vector.load %arg2[%c0_1, %c0_2] : memref<32x32xf32, #tpu.memory_space<vmem>>, vector<32x32xf32>
    %cst = arith.constant dense<0.000000e+00> : vector<8x32xf32>
    %2 = tpu.matmul %0, %1, %cst {dimension_numbers = #tpu.dot_dimension_numbers<[1], [0], [0], [1], [0, 0, 1, 1], [], []>} : vector<8x32xf32>, vector<32x32xf32>, vector<8x32xf32> -> vector<8x32xf32>
    %cst_3 = arith.constant 1.000000e+00 : f32
    %3 = vector.broadcast %cst_3 : f32 to vector<8x32xf32>
    %4 = arith.mulf %3, %2 : vector<8x32xf32>
    %cst_4 = arith.constant 5.000000e-01 : f32
    %5 = vector.broadcast %cst_4 : f32 to vector<8x32xf32>
    %6 = arith.addf %4, %5 : vector<8x32xf32>
    %7 = arith.negf %6 : vector<8x32xf32>
    %8 = math.exp %7 : vector<8x32xf32>
    %cst_5 = arith.constant 1.000000e+00 : f32
    %9 = vector.broadcast %cst_5 : f32 to vector<8x32xf32>
    %10 = arith.addf %9, %8 : vector<8x32xf32>
    %11 = arith.divf %9, %10 : vector<8x32xf32>
    %cst_6 = arith.constant 0x4B800000 : f32
    %12 = vector.broadcast %cst_6 : f32 to vector<8x32xf32>
    %13 = arith.mulf %11, %12 : vector<8x32xf32>
    %14 = arith.fptoui %13 : vector<8x32xf32> to vector<8x32xi32>
    %c0_7 = arith.constant 0 : index
    %c0_8 = arith.constant 0 : index
    %15 = vector.load %arg4[%c0_7, %c0_8] : memref<8x32xi32, #tpu.memory_space<vmem>>, vector<8x32xi32>
    %c8_i32 = arith.constant 8 : i32
    %16 = vector.broadcast %c8_i32 : i32 to vector<8x32xi32>
    %17 = arith.shrui %15, %16 : vector<8x32xi32>
    %18 = arith.cmpi ugt, %17, %14 : vector<8x32xi32>
    %c0_9 = arith.constant 0 : index
    %c0_10 = arith.constant 0 : index
    %19 = vector.load %arg3[%c0_9, %c0_10] : memref<8x32xf32, #tpu.memory_space<vmem>>, vector<8x32xf32>
    %cst_11 = arith.constant 0.000000e+00 : f32
    %20 = vector.broadcast %cst_11 : f32 to vector<8x32xf32>
    %21 = arith.select %18, %19, %20 : vector<8x32xi1>, vector<8x32xf32>
    %c0_12 = arith.constant 0 : index
    %c0_13 = arith.constant 0 : index
    %22 = vector.load %arg5[%c0_12, %c0_13] : memref<8x32xf32, #tpu.memory_space<vmem>>, vector<8x32xf32>
    tpu.vector_store %arg5[%c0_12, %c0_13], %21 {strides = array<i32>} : memref<8x32xf32, #tpu.memory_space<vmem>>, vector<8x32xf32>,
    return
  }
  func.func @transform_0(%arg0: i32) -> (i32, i32) {
    %c0_i32 = arith.constant 0 : i32
    %c0_i32_0 = arith.constant 0 : i32
    return %arg0, %c0_i32 : i32, i32
  }
  func.func @transform_1(%arg0: i32) -> (i32, i32) {
    %c0_i32 = arith.constant 0 : i32
    %c0_i32_0 = arith.constant 0 : i32
    %c0_i32_1 = arith.constant 0 : i32
    return %c0_i32, %c0_i32_0 : i32, i32
  }
  func.func @transform_2(%arg0: i32) -> (i32, i32) {
    %c0_i32 = arith.constant 0 : i32
    %c0_i32_0 = arith.constant 0 : i32
    return %arg0, %c0_i32 : i32, i32
  }
  func.func @transform_3(%arg0: i32) -> (i32, i32) {
    %c0_i32 = arith.constant 0 : i32
    %c0_i32_0 = arith.constant 0 : i32
    return %arg0, %c0_i32 : i32, i32
  }
  func.func @transform_4(%arg0: i32) -> (i32, i32) {
    %c0_i32 = arith.constant 0 : i32
    %c0_i32_0 = arith.constant 0 : i32
    return %arg0, %c0_i32 : i32, i32
  }
}

</mosaic_0001>

<llo_original>
// kernel: tpu_custom_call.1
$region0: #{tpu_custom_call.1}
  #allocation0 [shape = 'u32[]', space=smem, size = 0x4, offset = 0x4, fixed_abs, tag = 'smem constant byte address 0x4 - core index']
  #allocation1 [shape = 'u32[72,128]{1,0:T(1,128)}', space=vmem, size = 0x9000, scoped, tag = 'internal scratch']
  %s0 = inlined_call_operand.hbm [shape: f32[8,32], index: 0, kind: input, shape index: {}]
  %s1 = inlined_call_operand.hbm [shape: f32[32,32], index: 1, kind: input, shape index: {}]
  %s2 = inlined_call_operand.hbm [shape: f32[8,32], index: 2, kind: input, shape index: {}]
  %s3 = inlined_call_operand.hbm [shape: u32[8,32], index: 3, kind: input, shape index: {}]
  %s4 = inlined_call_operand.hbm [shape: f32[8,32], index: 4, kind: output, shape index: {}]
  %s5 = sld [smem:[#allocation0]]
  $region42: #{tpu_custom_call.1} parent=0
    _
  %s7 = ssub.s32 1, %s5
  %s8 = scalar_select 0, %s7, %s5
  $region1: #{tpu_custom_call.1} parent=0
    #allocation2 [shape = 'u8[4096]{0}', space=vmem, size = 0x1000, scoped, tag = 'input window, operand 0, single buffered']
    #allocation3 [shape = 's32[1]{0}', space=sflag, size = 0x4, scoped, tag = 'scoped memory for tpu_custom_call.1']
    #allocation4 [shape = 's32[1]{0}', space=sflag, size = 0x4, scoped, tag = 'scoped memory for tpu_custom_call.1']
    #allocation5 [shape = 'u8[16384]{0}', space=vmem, size = 0x4000, scoped, tag = 'input window, operand 1, single buffered']
    #allocation6 [shape = 's32[1]{0}', space=sflag, size = 0x4, scoped, tag = 'scoped memory for tpu_custom_call.1']
    #allocation7 [shape = 'u8[4096]{0}', space=vmem, size = 0x1000, scoped, tag = 'input window, operand 2, single buffered']
    #allocation8 [shape = 'u8[4096]{0}', space=vmem, size = 0x1000, scoped, tag = 'input window, operand 3, single buffered']
    #allocation9 [shape = 's32[1]{0}', space=sflag, size = 0x4, scoped, tag = 'scoped memory for tpu_custom_call.1']
    #allocation10 [shape = 'u8[4096]{0}', space=vmem, size = 0x1000, scoped, tag = 'output window, operand 0, single buffered']
    %9 = vsyncpa [#allocation3], 0
    %10 = vsyncpa [#allocation6], 0
    %11 = vsyncpa [#allocation9], 0
    %12 = vsyncpa [#allocation4], 0
    // Predicated region
    $region2: #{tpu_custom_call.1} parent=1 // pred_check
      _
    $region3: #{tpu_custom_call.1} parent=1 // pred_check_branch
      %14 = sbr.rel (0) target = $region5
    $region4: #{tpu_custom_call.1} parent=1 // pred_region
      %16 = vsyncadd [#allocation3], 0
      %s18 = sshll.u32 %s0, 4
      %s19 = int_to_ptr.hbm [resolvable:$true] %s18
      %s20 = sshll.u32 [#allocation2], 4
      %s21 = int_to_ptr.vmem [resolvable:$true] %s20
      %23 = dma.hbm_to_vmem [thread:$0]  %s19, 128, %s21, [#allocation3]
    $region5: #{tpu_custom_call.1} parent=1 // pred_fallthru
      _
    // Predicated region
    $region6: #{tpu_custom_call.1} parent=1 // pred_check
      _
    $region7: #{tpu_custom_call.1} parent=1 // pred_check_branch
      %25 = sbr.rel (0) target = $region9
    $region8: #{tpu_custom_call.1} parent=1 // pred_region
      %27 = vsyncadd [#allocation6], 0
      %s28 = sshll.u32 %s1, 4
      %s29 = int_to_ptr.hbm [resolvable:$true] %s28
      %s30 = sshll.u32 [#allocation5], 4
      %s31 = int_to_ptr.vmem [resolvable:$true] %s30
      %36 = dma.hbm_to_vmem [thread:$0]  %s29, 512, %s31, [#allocation6], 128, 128, 8
    $region9: #{tpu_custom_call.1} parent=1 // pred_fallthru
      _
    // Predicated region
    $region10: #{tpu_custom_call.1} parent=1 // pred_check
      _
    $region11: #{tpu_custom_call.1} parent=1 // pred_check_branch
      %38 = sbr.rel (0) target = $region13
    $region12: #{tpu_custom_call.1} parent=1 // pred_region
      %40 = vsyncadd [#allocation6], 0
      %s42 = sshll.u32 %s2, 4
      %s43 = int_to_ptr.hbm [resolvable:$true] %s42
      %s44 = sshll.u32 [#allocation7], 4
      %s45 = int_to_ptr.vmem [resolvable:$true] %s44
      %47 = dma.hbm_to_vmem [thread:$0]  %s43, 128, %s45, [#allocation6]
    $region13: #{tpu_custom_call.1} parent=1 // pred_fallthru
      _
    // Predicated region
    $region14: #{tpu_custom_call.1} parent=1 // pred_check
      _
    $region15: #{tpu_custom_call.1} parent=1 // pred_check_branch
      %49 = sbr.rel (0) target = $region17
    $region16: #{tpu_custom_call.1} parent=1 // pred_region
      %51 = vsyncadd [#allocation9], 0
      %s53 = sshll.u32 %s3, 4
      %s54 = int_to_ptr.hbm [resolvable:$true] %s53
      %s55 = sshll.u32 [#allocation8], 4
      %s56 = int_to_ptr.vmem [resolvable:$true] %s55
      %58 = dma.hbm_to_vmem [thread:$0]  %s54, 128, %s56, [#allocation9]
    $region17: #{tpu_custom_call.1} parent=1 // pred_fallthru
      _
    // Predicated region
    $region18: #{tpu_custom_call.1} parent=1 // pred_check
      _
    $region19: #{tpu_custom_call.1} parent=1 // pred_check_branch
      %60 = sbr.rel (0) target = $region21
    $region20: #{tpu_custom_call.1} parent=1 // pred_region
      %62 = dma.done [#allocation3], 128
    $region21: #{tpu_custom_call.1} parent=1 // pred_fallthru
      _
    // Predicated region
    $region22: #{tpu_custom_call.1} parent=1 // pred_check
      _
    $region23: #{tpu_custom_call.1} parent=1 // pred_check_branch
      %64 = sbr.rel (0) target = $region25
    $region24: #{tpu_custom_call.1} parent=1 // pred_region
      %66 = dma.done [#allocation6], 512
    $region25: #{tpu_custom_call.1} parent=1 // pred_fallthru
      _
    // Predicated region
    $region26: #{tpu_custom_call.1} parent=1 // pred_check
      _
    $region27: #{tpu_custom_call.1} parent=1 // pred_check_branch
      %68 = sbr.rel (0) target = $region29
    $region28: #{tpu_custom_call.1} parent=1 // pred_region
      %70 = dma.done [#allocation6], 128
    $region29: #{tpu_custom_call.1} parent=1 // pred_fallthru
      _
    // Predicated region
    $region30: #{tpu_custom_call.1} parent=1 // pred_check
      _
    $region31: #{tpu_custom_call.1} parent=1 // pred_check_branch
      %72 = sbr.rel (0) target = $region33
    $region32: #{tpu_custom_call.1} parent=1 // pred_region
      %74 = dma.done [#allocation9], 128
    $region33: #{tpu_custom_call.1} parent=1 // pred_fallthru
      _
    %v75 = vld [vmem:[#allocation2] sm:$0xff]
    %v76 = vld [vmem:[#allocation5] sm:$0xff]
    %v77 = vld [vmem:[#allocation5 + $0x8] sm:$0xff]
    %v78 = vld [vmem:[#allocation5 + $0x10] sm:$0xff]
    %v79 = vld [vmem:[#allocation5 + $0x18] sm:$0xff]
    %vm80 = vcmask 261120
    %v82 = vsel %vm80, %v75, 0
    %84 = vmatpush.msra.mxu0 0.0
    %85 = vmatpush.msra.mxu0 0.0
    %86 = vmatpush.msra.mxu0 0.0
    %87 = vmatpush.msra.mxu0 0.0
    %88 = vmatpush.msra.mxu0 0.0
    %89 = vmatpush.msra.mxu0 0.0
    %90 = vmatpush.msra.mxu0 0.0
    %91 = vmatpush.msra.mxu0 0.0
    %92 = vmatpush.msra.mxu0 0.0
    %93 = vmatpush.msra.mxu0 0.0
    %94 = vmatpush.msra.mxu0 0.0
    %95 = vmatpush.msra.mxu0 0.0
    %96 = vmatpush.msra.mxu0 %v79
    %97 = vmatpush.msra.mxu0 %v78
    %98 = vmatpush.msra.mxu0 %v77
    %99 = vmatpush.msra.mxu0 %v76
    %100 = vmatmul.f32.gmra.mxu0 %v82
    %v101 = vpop.f32.mrf.mxu0
    %v102 = vadd.f32 0.5, %v101
    %103 = vdwg.mxu0
    %v104 = vxor.u32 %v102, 2147483648
    %v105 = vmul.f32 %v104, 1.442695
    %v106 = vpow.pop %v105
    %v107 = vadd.f32 %v106, 1.0
    %v108 = vrcp.pop %v107
    %v109 = vmul.f32 %v107, %v108
    %v110 = vsub.f32 1.0, %v109
    %v111 = vmul.f32 %v108, %v110
    %v112 = vadd.f32 %v108, %v111
    %vm113 = vweird.f32 %v107
    %vm114 = vweird.f32 %v108
    %vm115 = vmor %vm113, %vm114
    %v116 = vsel %vm115, %v108, %v112
    %v117 = vand.u32 2147483647, %v107
    %vm118 = vcmp.eq.f32.partialorder %v117, 8.507059e+37
    %v119 = vand.u32 %v107, 2147483648
    %v120 = vor.u32 1.1754944e-38, %v119
    %v121 = vsel %vm118, %v120, %v116
    %v122 = vmul.f32 1.0, %v121
    %v123 = vmul.f32 %v122, 16777216.0
    %v124 = vmax.f32 %v123, 0.0
    %v125 = vsub.f32 %v124, 2.1474836e+09
    %vm126 = vcmp.lt.s32.totalorder %v125, 0
    %v127 = vceil.f32 %v125
    %v128 = vfloor.f32 %v125
    %v129 = vsel %vm126, %v127, %v128
    %v130 = vcvt.f32.s32 %v129
    %v131 = vadd.s32 2147483648, %v130
    %vm132 = vcmp.lt.s32.totalorder %v124, 0
    %v133 = vceil.f32 %v124
    %v134 = vfloor.f32 %v124
    %v135 = vsel %vm132, %v133, %v134
    %v136 = vcvt.f32.s32 %v135
    %vm137 = vcmp.ge.f32.partialorder %v124, 2.1474836e+09
    %v138 = vsel %vm137, %v131, %v136
    %v139 = vld [vmem:[#allocation8] sm:$0xff]
    %v140 = vshrl.u32 %v139, 8
    %v141 = vadd.s32 %v140, 2147483648
    %v142 = vadd.s32 %v138, 2147483648
    %vm143 = vcmp.gt.s32.totalorder %v141, %v142
    %v144 = vld [vmem:[#allocation7] sm:$0xff]
    %v145 = vsel %vm143, %v144, 0.0
    %146 = vst.msk [vmem:[#allocation10] sm:$0xff] %vm80, %v145
    // Predicated region
    $region34: #{tpu_custom_call.1} parent=1 // pred_check
      _
    $region35: #{tpu_custom_call.1} parent=1 // pred_check_branch
      %148 = sbr.rel (0) target = $region37
    $region36: #{tpu_custom_call.1} parent=1 // pred_region
      %150 = vsyncadd [#allocation4], 0
      %s152 = sshll.u32 [#allocation10], 4
      %s153 = int_to_ptr.vmem [resolvable:$true] %s152
      %s154 = sshll.u32 %s4, 4
      %s155 = int_to_ptr.hbm [resolvable:$true] %s154
      %157 = dma.vmem_to_hbm [thread:$0]  %s153, 128, %s155, [#allocation4]
    $region37: #{tpu_custom_call.1} parent=1 // pred_fallthru
      _
    // Predicated region
    $region38: #{tpu_custom_call.1} parent=1 // pred_check
      _
    $region39: #{tpu_custom_call.1} parent=1 // pred_check_branch
      %159 = sbr.rel (0) target = $region41
    $region40: #{tpu_custom_call.1} parent=1 // pred_region
      %161 = dma.done [#allocation4], 128
    $region41: #{tpu_custom_call.1} parent=1 // pred_fallthru
      _
    %162 = vsyncpa [#allocation3], 1
    %163 = vsyncpa [#allocation6], 1
    %164 = vsyncpa [#allocation9], 1
    %165 = vsyncpa [#allocation4], 1

</llo_original>
